<compile_context>
chip_gen: v6e
topology: v6e:2x2x1
jax: 0.10.0
libtpu: 0.0.40
codegen_flags: <defaults>
</compile_context>

<pallas_src>
import jax
import jax.numpy as jnp
from jax.experimental import pallas as pl
from jax.experimental.pallas import tpu as pltpu


def gnn_kernel(x_ref, a_ref, w_pre_ref, w_mp_ref, w_head_ref, b_ref, out_ref):
    """One grid step = a block of `G` graphs (G*N node rows)."""
    G = a_ref.shape[0]
    N = a_ref.shape[1]
    DI = w_mp_ref.shape[-1]          # dim_inner
    DO = w_head_ref.shape[-1]        # dim_out

    biases = b_ref[...]              # (4, DB) f32, packed [b_pre; b1; b2; b_head]
    b_pre = biases[0:1, :DI]
    b_head = biases[3:4, :DO]

    # pre_mp: Linear + ReLU  (bf16 operands, f32 accumulation)
    x = x_ref[...]                   # (G*N, D_in) bf16
    h = jnp.dot(x, w_pre_ref[...], preferred_element_type=jnp.float32) + b_pre
    h = jnp.maximum(h, 0.0)          # f32 on the VPU

    # two message-passing layers: relu(A @ (h @ W_l) + b_l)
    for layer in range(2):
        hw = jnp.dot(h.astype(jnp.bfloat16), w_mp_ref[layer],
                     preferred_element_type=jnp.float32)           # (G*N, DI) f32
        hw_bf = hw.astype(jnp.bfloat16)
        if G == 1:
            agg = jnp.dot(a_ref[0], hw_bf,
                          preferred_element_type=jnp.float32)      # (N, DI)
        else:
            agg = jnp.einsum("gij,gjd->gid", a_ref[...],
                             hw_bf.reshape(G, N, DI),
                             preferred_element_type=jnp.float32).reshape(G * N, DI)
        b_l = biases[layer + 1:layer + 2, :DI]
        h = jnp.maximum(agg + b_l, 0.0)

    # graph head: mean pooling (in-kernel reduce) + Linear
    if G == 1:
        pooled = jnp.sum(h, axis=0, keepdims=True) * (1.0 / N)     # (1, DI) f32
    else:
        pooled = jnp.mean(h.reshape(G, N, DI), axis=1)             # (G, DI) f32
    y = jnp.dot(pooled.astype(jnp.bfloat16), w_head_ref[...],
                preferred_element_type=jnp.float32) + b_head       # (G, DO)
    out_ref[...] = y.astype(out_ref.dtype)


def gnn_forward(x, a_norm, params, *, graphs_per_block=1):
    B, N, D_in = x.shape
    dim_inner = params["w_pre"].shape[1]
    dim_out = params["w_head"].shape[1]
    G = graphs_per_block
    assert B % G == 0, "batch must be divisible by graphs_per_block"
    nb = B // G

    # --- bf16 MXU operands, flattened node features ---
    x_flat = x.reshape(B * N, D_in).astype(jnp.bfloat16)
    a_bf = a_norm.astype(jnp.bfloat16)
    w_pre = params["w_pre"].astype(jnp.bfloat16)
    w_mp = jnp.stack([params["w1"], params["w2"]], axis=0).astype(jnp.bfloat16)
    w_head = params["w_head"].astype(jnp.bfloat16)

    # --- pack the four biases into one small f32 array (one DMA, stays f32) ---
    DB = max(dim_inner, dim_out)
    biases = jnp.zeros((4, DB), jnp.float32)
    biases = biases.at[0, :dim_inner].set(params["b_pre"][0])
    biases = biases.at[1, :dim_inner].set(params["b1"][0])
    biases = biases.at[2, :dim_inner].set(params["b2"][0])
    biases = biases.at[3, :dim_out].set(params["b_head"][0])

    # --- advisory cost estimate for XLA scheduling around this tiny call ---
    BN = B * N
    flops = (2 * BN * D_in * dim_inner
             + 2 * (2 * BN * dim_inner * dim_inner + 2 * B * N * N * dim_inner)
             + BN * dim_inner
             + 2 * B * dim_inner * dim_out)
    bytes_accessed = (2 * (x_flat.size + a_bf.size + w_pre.size + w_mp.size + w_head.size)
                      + 4 * (biases.size + B * dim_out))
    cost = pl.CostEstimate(flops=int(flops), transcendentals=0,
                           bytes_accessed=int(bytes_accessed))

    out = pl.pallas_call(
        gnn_kernel,
        out_shape=jax.ShapeDtypeStruct((nb, G, dim_out), jnp.float32),
        grid=(nb,),
        in_specs=[
            pl.BlockSpec((G * N, D_in), lambda i: (i, 0)),            # node features
            pl.BlockSpec((G, N, N), lambda i: (i, 0, 0)),             # per-graph A_norm
            pl.BlockSpec((D_in, dim_inner), lambda i: (0, 0)),        # W_pre (resident)
            pl.BlockSpec((2, dim_inner, dim_inner), lambda i: (0, 0, 0)),  # W1/W2 stacked
            pl.BlockSpec((dim_inner, dim_out), lambda i: (0, 0)),     # W_head
            pl.BlockSpec((4, DB), lambda i: (0, 0)),                  # packed biases
        ],
        out_specs=pl.BlockSpec((pl.Squeezed(), G, dim_out), lambda i: (i, 0, 0)),
        compiler_params=pltpu.CompilerParams(
            dimension_semantics=("parallel",)),                       # megacore on v7x
        cost_estimate=cost,
    )(x_flat, a_bf, w_pre, w_mp, w_head, biases)

    return out.reshape(B, dim_out)


def gnn_forward_ref(x, a_norm, params):
    """Pure-JAX f32 reference of the same forward pass."""
    h = x
    h = jax.nn.relu(h @ params["w_pre"] + params["b_pre"])
    h = jax.nn.relu(jnp.einsum("bij,bjd->bid", a_norm, h @ params["w1"]) + params["b1"])
    h = jax.nn.relu(jnp.einsum("bij,bjd->bid", a_norm, h @ params["w2"]) + params["b2"])
    pooled = jnp.mean(h, axis=1)
    return pooled @ params["w_head"] + params["b_head"]


def make_params(key, dim_in, dim_inner, dim_out):
    ks = jax.random.split(key, 5)

    def glorot(k, fan_in, fan_out):
        scale = jnp.sqrt(2.0 / (fan_in + fan_out))
        return jax.random.normal(k, (fan_in, fan_out), jnp.float32) * scale

    return {
        "w_pre": glorot(ks[0], dim_in, dim_inner),
        "b_pre": jnp.zeros((1, dim_inner), jnp.float32),
        "w1": glorot(ks[1], dim_inner, dim_inner),
        "b1": jnp.zeros((1, dim_inner), jnp.float32),
        "w2": glorot(ks[2], dim_inner, dim_inner),
        "b2": jnp.zeros((1, dim_inner), jnp.float32),
        "w_head": glorot(ks[3], dim_inner, dim_out),
        "b_head": jnp.zeros((1, dim_out), jnp.float32),
    }


def make_graph_batch(key, B, N, dim_in):
    kx, ka = jax.random.split(key)
    x = jax.random.normal(kx, (B, N, dim_in), jnp.float32)
    # random symmetric adjacency with self loops, symmetric D^{-1/2} normalization
    logits = jax.random.uniform(ka, (B, N, N))
    adj = (logits + jnp.swapaxes(logits, 1, 2) > 1.0).astype(jnp.float32)
    adj = adj + jnp.eye(N, dtype=jnp.float32)[None]
    adj = jnp.minimum(adj, 1.0)
    deg = jnp.sum(adj, axis=-1)
    d_inv_sqrt = 1.0 / jnp.sqrt(deg)
    a_norm = adj * d_inv_sqrt[:, :, None] * d_inv_sqrt[:, None, :]
    return x, a_norm


if __name__ == "__main__":
    B, N = 2, 16            # 2 graphs, 16 nodes each
    dim_in, dim_inner, dim_out = 8, 32, 4

    key = jax.random.PRNGKey(0)
    k_data, k_params = jax.random.split(key)
    x, a_norm = make_graph_batch(k_data, B, N, dim_in)
    params = make_params(k_params, dim_in, dim_inner, dim_out)

    out = gnn_forward(x, a_norm, params, graphs_per_block=1)
    out = jax.block_until_ready(out)

    ref = gnn_forward_ref(x, a_norm, params)
    assert out.shape == (B, dim_out)
    # bf16 MXU operands (f32 accumulation): loosen tolerance vs. the f32 reference.
    assert jnp.allclose(out, ref, atol=5e-2, rtol=5e-2)

    print("KERNEL_OK")
</pallas_src>

<mosaic_0001>
module attributes {stable_mosaic.version = 11 : i64} {
  func.func @gnn_kernel(%arg0: i32, %arg1: memref<16x8xbf16, #tpu.memory_space<vmem>>, %arg2: memref<1x16x16xbf16, #tpu.memory_space<vmem>>, %arg3: memref<8x32xbf16, #tpu.memory_space<vmem>>, %arg4: memref<2x32x32xbf16, #tpu.memory_space<vmem>>, %arg5: memref<32x4xbf16, #tpu.memory_space<vmem>>, %arg6: memref<4x32xf32, #tpu.memory_space<vmem>>, %arg7: memref<1x1x4xf32, #tpu.memory_space<vmem>>) attributes {dimension_semantics = [#tpu.dimension_semantics<parallel>], iteration_bounds = array<i64: 2>, scalar_prefetch = 0 : i64, scratch_operands = 0 : i64, tpu.core_type = #tpu.core_type<tc>, window_params = [{transform_indices = @transform_0, window_bounds = array<i64: 16, 8>}, {transform_indices = @transform_1, window_bounds = array<i64: 1, 16, 16>}, {pipeline_mode = #tpu.pipeline_mode<synchronous>, transform_indices = @transform_2, window_bounds = array<i64: 8, 32>}, {pipeline_mode = #tpu.pipeline_mode<synchronous>, transform_indices = @transform_3, window_bounds = array<i64: 2, 32, 32>}, {pipeline_mode = #tpu.pipeline_mode<synchronous>, transform_indices = @transform_4, window_bounds = array<i64: 32, 4>}, {pipeline_mode = #tpu.pipeline_mode<synchronous>, transform_indices = @transform_5, window_bounds = array<i64: 4, 32>}, {transform_indices = @transform_6, window_bounds = array<i64: 1, 1, 4>}]} {
    %c0 = arith.constant 0 : index
    %c0_0 = arith.constant 0 : index
    %0 = vector.load %arg6[%c0, %c0_0] : memref<4x32xf32, #tpu.memory_space<vmem>>, vector<4x32xf32>
    %1 = vector.extract_strided_slice %0 {offsets = [0, 0], sizes = [1, 32], strides = [1, 1]} : vector<4x32xf32> to vector<1x32xf32>
    %2 = vector.extract_strided_slice %0 {offsets = [3, 0], sizes = [1, 4], strides = [1, 1]} : vector<4x32xf32> to vector<1x4xf32>
    %c0_1 = arith.constant 0 : index
    %c0_2 = arith.constant 0 : index
    %3 = vector.load %arg1[%c0_1, %c0_2] : memref<16x8xbf16, #tpu.memory_space<vmem>>, vector<16x8xbf16>
    %c0_3 = arith.constant 0 : index
    %c0_4 = arith.constant 0 : index
    %4 = vector.load %arg3[%c0_3, %c0_4] : memref<8x32xbf16, #tpu.memory_space<vmem>>, vector<8x32xbf16>
    %cst = arith.constant dense<0.000000e+00> : vector<16x32xf32>
    %5 = tpu.matmul %3, %4, %cst {dimension_numbers = #tpu.dot_dimension_numbers<[1], [0], [0], [1], [0, 0, 1, 1], [], []>} : vector<16x8xbf16>, vector<8x32xbf16>, vector<16x32xf32> -> vector<16x32xf32>
    %6 = vector.broadcast %1 : vector<1x32xf32> to vector<16x32xf32>
    %7 = arith.addf %5, %6 : vector<16x32xf32>
    %cst_5 = arith.constant 0.000000e+00 : f32
    %8 = vector.broadcast %cst_5 : f32 to vector<16x32xf32>
    %9 = arith.maximumf %7, %8 : vector<16x32xf32>
    %10 = arith.truncf %9 : vector<16x32xf32> to vector<16x32xbf16>
    %c0_6 = arith.constant 0 : index
    %c0_7 = arith.constant 0 : index
    %c0_8 = arith.constant 0 : index
    %11 = vector.load %arg4[%c0_6, %c0_7, %c0_8] : memref<2x32x32xbf16, #tpu.memory_space<vmem>>, vector<1x32x32xbf16>
    %12 = vector.shape_cast %11 : vector<1x32x32xbf16> to vector<32x32xbf16>
    %cst_9 = arith.constant dense<0.000000e+00> : vector<16x32xf32>
    %13 = tpu.matmul %10, %12, %cst_9 {dimension_numbers = #tpu.dot_dimension_numbers<[1], [0], [0], [1], [0, 0, 1, 1], [], []>} : vector<16x32xbf16>, vector<32x32xbf16>, vector<16x32xf32> -> vector<16x32xf32>
    %14 = arith.truncf %13 : vector<16x32xf32> to vector<16x32xbf16>
    %c0_10 = arith.constant 0 : index
    %c0_11 = arith.constant 0 : index
    %c0_12 = arith.constant 0 : index
    %15 = vector.load %arg2[%c0_10, %c0_11, %c0_12] : memref<1x16x16xbf16, #tpu.memory_space<vmem>>, vector<1x16x16xbf16>
    %16 = vector.shape_cast %15 : vector<1x16x16xbf16> to vector<16x16xbf16>
    %cst_13 = arith.constant dense<0.000000e+00> : vector<16x32xf32>
    %17 = tpu.matmul %16, %14, %cst_13 {dimension_numbers = #tpu.dot_dimension_numbers<[1], [0], [0], [1], [0, 0, 1, 1], [], []>} : vector<16x16xbf16>, vector<16x32xbf16>, vector<16x32xf32> -> vector<16x32xf32>
    %18 = vector.extract_strided_slice %0 {offsets = [1, 0], sizes = [1, 32], strides = [1, 1]} : vector<4x32xf32> to vector<1x32xf32>
    %19 = vector.broadcast %18 : vector<1x32xf32> to vector<16x32xf32>
    %20 = arith.addf %17, %19 : vector<16x32xf32>
    %cst_14 = arith.constant 0.000000e+00 : f32
    %21 = vector.broadcast %cst_14 : f32 to vector<16x32xf32>
    %22 = arith.maximumf %20, %21 : vector<16x32xf32>
    %23 = arith.truncf %22 : vector<16x32xf32> to vector<16x32xbf16>
    %c1 = arith.constant 1 : index
    %c0_15 = arith.constant 0 : index
    %c0_16 = arith.constant 0 : index
    %24 = vector.load %arg4[%c1, %c0_15, %c0_16] : memref<2x32x32xbf16, #tpu.memory_space<vmem>>, vector<1x32x32xbf16>
    %25 = vector.shape_cast %24 : vector<1x32x32xbf16> to vector<32x32xbf16>
    %cst_17 = arith.constant dense<0.000000e+00> : vector<16x32xf32>
    %26 = tpu.matmul %23, %25, %cst_17 {dimension_numbers = #tpu.dot_dimension_numbers<[1], [0], [0], [1], [0, 0, 1, 1], [], []>} : vector<16x32xbf16>, vector<32x32xbf16>, vector<16x32xf32> -> vector<16x32xf32>
    %27 = arith.truncf %26 : vector<16x32xf32> to vector<16x32xbf16>
    %c0_18 = arith.constant 0 : index
    %c0_19 = arith.constant 0 : index
    %c0_20 = arith.constant 0 : index
    %28 = vector.load %arg2[%c0_18, %c0_19, %c0_20] : memref<1x16x16xbf16, #tpu.memory_space<vmem>>, vector<1x16x16xbf16>
    %29 = vector.shape_cast %28 : vector<1x16x16xbf16> to vector<16x16xbf16>
    %cst_21 = arith.constant dense<0.000000e+00> : vector<16x32xf32>
    %30 = tpu.matmul %29, %27, %cst_21 {dimension_numbers = #tpu.dot_dimension_numbers<[1], [0], [0], [1], [0, 0, 1, 1], [], []>} : vector<16x16xbf16>, vector<16x32xbf16>, vector<16x32xf32> -> vector<16x32xf32>
    %31 = vector.extract_strided_slice %0 {offsets = [2, 0], sizes = [1, 32], strides = [1, 1]} : vector<4x32xf32> to vector<1x32xf32>
    %32 = vector.broadcast %31 : vector<1x32xf32> to vector<16x32xf32>
    %33 = arith.addf %30, %32 : vector<16x32xf32>
    %cst_22 = arith.constant 0.000000e+00 : f32
    %34 = vector.broadcast %cst_22 : f32 to vector<16x32xf32>
    %35 = arith.maximumf %33, %34 : vector<16x32xf32>
    %cst_23 = arith.constant dense<0.000000e+00> : vector<32xf32>
    %36 = vector.multi_reduction <add>, %35, %cst_23 [0] : vector<16x32xf32> to vector<32xf32>
    %37 = vector.shape_cast %36 : vector<32xf32> to vector<1x32xf32>
    %cst_24 = arith.constant 6.250000e-02 : f32
    %38 = vector.broadcast %cst_24 : f32 to vector<1x32xf32>
    %39 = arith.mulf %37, %38 : vector<1x32xf32>
    %40 = arith.truncf %39 : vector<1x32xf32> to vector<1x32xbf16>
    %c0_25 = arith.constant 0 : index
    %c0_26 = arith.constant 0 : index
    %41 = vector.load %arg5[%c0_25, %c0_26] : memref<32x4xbf16, #tpu.memory_space<vmem>>, vector<32x4xbf16>
    %cst_27 = arith.constant dense<0.000000e+00> : vector<1x4xf32>
    %42 = tpu.matmul %40, %41, %cst_27 {dimension_numbers = #tpu.dot_dimension_numbers<[1], [0], [0], [1], [0, 0, 1, 1], [], []>} : vector<1x32xbf16>, vector<32x4xbf16>, vector<1x4xf32> -> vector<1x4xf32>
    %43 = arith.addf %42, %2 : vector<1x4xf32>
    %c0_28 = arith.constant 0 : index
    %c0_29 = arith.constant 0 : index
    %c0_30 = arith.constant 0 : index
    %44 = vector.load %arg7[%c0_28, %c0_29, %c0_30] : memref<1x1x4xf32, #tpu.memory_space<vmem>>, vector<1x1x4xf32>
    %45 = vector.shape_cast %44 : vector<1x1x4xf32> to vector<1x4xf32>
    %46 = vector.shape_cast %43 : vector<1x4xf32> to vector<1x1x4xf32>
    tpu.vector_store %arg7[%c0_28, %c0_29, %c0_30], %46 {strides = array<i32>} : memref<1x1x4xf32, #tpu.memory_space<vmem>>, vector<1x1x4xf32>,
    return
  }
  func.func @transform_0(%arg0: i32) -> (i32, i32) {
    %c0_i32 = arith.constant 0 : i32
    %c0_i32_0 = arith.constant 0 : i32
    return %arg0, %c0_i32 : i32, i32
  }
  func.func @transform_1(%arg0: i32) -> (i32, i32, i32) {
    %c0_i32 = arith.constant 0 : i32
    %c0_i32_0 = arith.constant 0 : i32
    %c0_i32_1 = arith.constant 0 : i32
    return %arg0, %c0_i32, %c0_i32_0 : i32, i32, i32
  }
  func.func @transform_2(%arg0: i32) -> (i32, i32) {
    %c0_i32 = arith.constant 0 : i32
    %c0_i32_0 = arith.constant 0 : i32
    %c0_i32_1 = arith.constant 0 : i32
    return %c0_i32, %c0_i32_0 : i32, i32
  }
  func.func @transform_3(%arg0: i32) -> (i32, i32, i32) {
    %c0_i32 = arith.constant 0 : i32
    %c0_i32_0 = arith.constant 0 : i32
    %c0_i32_1 = arith.constant 0 : i32
    %c0_i32_2 = arith.constant 0 : i32
    return %c0_i32, %c0_i32_0, %c0_i32_1 : i32, i32, i32
  }
  func.func @transform_4(%arg0: i32) -> (i32, i32) {
    %c0_i32 = arith.constant 0 : i32
    %c0_i32_0 = arith.constant 0 : i32
    %c0_i32_1 = arith.constant 0 : i32
    return %c0_i32, %c0_i32_0 : i32, i32
  }
  func.func @transform_5(%arg0: i32) -> (i32, i32) {
    %c0_i32 = arith.constant 0 : i32
    %c0_i32_0 = arith.constant 0 : i32
    %c0_i32_1 = arith.constant 0 : i32
    return %c0_i32, %c0_i32_0 : i32, i32
  }
  func.func @transform_6(%arg0: i32) -> (i32, i32, i32) {
    %c0_i32 = arith.constant 0 : i32
    %c0_i32_0 = arith.constant 0 : i32
    %c0_i32_1 = arith.constant 0 : i32
    return %arg0, %c0_i32, %c0_i32_0 : i32, i32, i32
  }
}

</mosaic_0001>

<llo_original>
// kernel: tpu_custom_call.1
$region0: #{tpu_custom_call.1}
  #allocation0 [shape = 'u32[]', space=smem, size = 0x4, offset = 0x4, fixed_abs, tag = 'smem constant byte address 0x4 - core index']
  #allocation1 [shape = 'u32[144,128]{1,0:T(1,128)}', space=vmem, size = 0x12000, scoped, tag = 'internal scratch']
  %s0 = inlined_call_operand.vmem [shape: bf16[32,8], index: 0, kind: input, shape index: {}]
  %s1 = inlined_call_operand.hbm [shape: bf16[2,16,16], index: 1, kind: input, shape index: {}]
  %s2 = inlined_call_operand.vmem [shape: bf16[8,32], index: 2, kind: input, shape index: {}]
  %s3 = inlined_call_operand.vmem [shape: bf16[2,32,32], index: 3, kind: input, shape index: {}]
  %s4 = inlined_call_operand.vmem [shape: bf16[32,4], index: 4, kind: input, shape index: {}]
  %s5 = inlined_call_operand.vmem [shape: f32[4,32], index: 5, kind: input, shape index: {}]
  %s6 = inlined_call_operand.hbm [shape: f32[2,1,4], index: 6, kind: output, shape index: {}]
  %s7 = sld [smem:[#allocation0]]
  $region61: #{tpu_custom_call.1} parent=0
    _
  %s9 = ssub.s32 1, %s7
  %s10 = scalar_select 0, %s9, %s7
  $region1: #{tpu_custom_call.1} parent=0
    #allocation2 [shape = 'u8[8192]{0}', space=vmem, size = 0x2000, scoped, tag = 'input window, operand 1']
    #allocation3 [shape = 's32[2]{0}', space=sflag, size = 0x8, scoped, tag = 'scoped memory for tpu_custom_call.1']
    #allocation4 [shape = 's32[2]{0}', space=sflag, size = 0x8, scoped, tag = 'scoped memory for tpu_custom_call.1']
    #allocation5 [shape = 'u8[1024]{0}', space=vmem, size = 0x400, scoped, tag = 'output window, operand 0']
    %11 = vsyncpa [#allocation3], 0
    %s12 = scalar_lea.sflag [#allocation3], 1
    %13 = vsyncpa %s12, 0
    %14 = vsyncpa [#allocation4], 0
    %s15 = scalar_lea.sflag [#allocation4], 1
    %16 = vsyncpa %s15, 0
    loop: start=0, step=1, limit=4
    $region2: #{tpu_custom_call.1} parent=1 // loop_pre_header
      _
    $region3: #{tpu_custom_call.1} parent=1 // loop_header
      %s18 = sphi 0, %s22
      %p19 = scmp.ge.s32.totalorder %s18, 4
      %s28 = sphi 0, %s30
      %s31 = sphi 0, %s28
      %s32 = sphi 0, %s31
      %s48 = sphi 0, %s32
      %s54 = sphi 0, %s56
      %s57 = sphi 0, %s54
      %s58 = sphi 0, %s57
      %s74 = sphi 0, %s58
      %s78 = sphi 0, %s78
      %s80 = sphi 0, %s78
      %s81 = sphi 0, %s80
      %s95 = sphi 0, %s81
      %s99 = sphi 0, %s99
      %s101 = sphi 0, %s99
      %s102 = sphi 0, %s101
      %s116 = sphi 0, %s102
      %s120 = sphi 0, %s120
      %s122 = sphi 0, %s120
      %s123 = sphi 0, %s122
      %s137 = sphi 0, %s123
      %s141 = sphi 0, %s141
      %s143 = sphi 0, %s141
      %s144 = sphi 0, %s143
      %s158 = sphi 0, %s144
      %s164 = sphi 0, %s166
      %s167 = sphi 0, %s164
      %s168 = sphi 0, %s167
      %s184 = sphi 0, %s168
    $region4: #{tpu_custom_call.1} parent=1 // loop_header_branch
      %21 = sbr.rel (%p19) target = $region8
    $region5: #{tpu_custom_call.1} parent=1 // loop_body
      %s23 = ssub.s32 %s18, 1
      %s24 = ssub.s32 %s18, 2
      %s25 = sadd.s32 %s18, 1
      %s26 = ssub.s32 %s18, %s25
      %p27 = scmp.eq.s32.totalorder %s26, 0
      %s29 = sadd.s32 %s28, 1
      %s30 = scalar_select %p27, %s28, %s29
      %p33 = pneg %p27
      %p34 = scmp.eq.s32.totalorder %s18, 1
      %p35 = por %p33, %p34
      %p36 = scmp.ne.s32.totalorder %s28, %s31
      %p37 = scmp.eq.s32.totalorder %s18, 0
      %p38 = por %p36, %p37
      %p39 = scmp.ne.s32.totalorder %s28, %s31
      %p40 = scmp.eq.s32.totalorder %s23, 1
      %p41 = por %p39, %p40
      %p42 = scmp.ne.s32.totalorder %s31, %s32
      %p43 = scmp.eq.s32.totalorder %s23, 0
      %p44 = por %p42, %p43
      %p45 = scmp.ne.s32.totalorder %s31, %s32
      %p46 = scmp.eq.s32.totalorder %s24, 1
      %p47 = por %p45, %p46
      %p49 = scmp.ne.s32.totalorder %s32, %s48
      %p50 = scmp.eq.s32.totalorder %s24, 0
      %p51 = por %p49, %p50
      %s52 = ssub.s32 %s18, %s25
      %p53 = scmp.eq.s32.totalorder %s52, 0
      %s55 = sadd.s32 %s54, 1
      %s56 = scalar_select %p53, %s54, %s55
      %p59 = pneg %p53
      %p60 = scmp.eq.s32.totalorder %s18, 1
      %p61 = por %p59, %p60
      %p62 = scmp.ne.s32.totalorder %s54, %s57
      %p63 = scmp.eq.s32.totalorder %s18, 0
      %p64 = por %p62, %p63
      %p65 = scmp.ne.s32.totalorder %s54, %s57
      %p66 = scmp.eq.s32.totalorder %s23, 1
      %p67 = por %p65, %p66
      %p68 = scmp.ne.s32.totalorder %s57, %s58
      %p69 = scmp.eq.s32.totalorder %s23, 0
      %p70 = por %p68, %p69
      %p71 = scmp.ne.s32.totalorder %s57, %s58
      %p72 = scmp.eq.s32.totalorder %s24, 1
      %p73 = por %p71, %p72
      %p75 = scmp.ne.s32.totalorder %s58, %s74
      %p76 = scmp.eq.s32.totalorder %s24, 0
      %p77 = por %p75, %p76
      %s79 = sadd.s32 %s78, 1
      %p82 = scmp.eq.s32.totalorder %s18, 1
      %p83 = scmp.ne.s32.totalorder %s78, %s80
      %p84 = scmp.eq.s32.totalorder %s18, 0
      %p85 = por %p83, %p84
      %p86 = scmp.ne.s32.totalorder %s78, %s80
      %p87 = scmp.eq.s32.totalorder %s23, 1
      %p88 = por %p86, %p87
      %p89 = scmp.ne.s32.totalorder %s80, %s81
      %p90 = scmp.eq.s32.totalorder %s23, 0
      %p91 = por %p89, %p90
      %p92 = scmp.ne.s32.totalorder %s80, %s81
      %p93 = scmp.eq.s32.totalorder %s24, 1
      %p94 = por %p92, %p93
      %p96 = scmp.ne.s32.totalorder %s81, %s95
      %p97 = scmp.eq.s32.totalorder %s24, 0
      %p98 = por %p96, %p97
      %s100 = sadd.s32 %s99, 1
      %p103 = scmp.eq.s32.totalorder %s18, 1
      %p104 = scmp.ne.s32.totalorder %s99, %s101
      %p105 = scmp.eq.s32.totalorder %s18, 0
      %p106 = por %p104, %p105
      %p107 = scmp.ne.s32.totalorder %s99, %s101
      %p108 = scmp.eq.s32.totalorder %s23, 1
      %p109 = por %p107, %p108
      %p110 = scmp.ne.s32.totalorder %s101, %s102
      %p111 = scmp.eq.s32.totalorder %s23, 0
      %p112 = por %p110, %p111
      %p113 = scmp.ne.s32.totalorder %s101, %s102
      %p114 = scmp.eq.s32.totalorder %s24, 1
      %p115 = por %p113, %p114
      %p117 = scmp.ne.s32.totalorder %s102, %s116
      %p118 = scmp.eq.s32.totalorder %s24, 0
      %p119 = por %p117, %p118
      %s121 = sadd.s32 %s120, 1
      %p124 = scmp.eq.s32.totalorder %s18, 1
      %p125 = scmp.ne.s32.totalorder %s120, %s122
      %p126 = scmp.eq.s32.totalorder %s18, 0
      %p127 = por %p125, %p126
      %p128 = scmp.ne.s32.totalorder %s120, %s122
      %p129 = scmp.eq.s32.totalorder %s23, 1
      %p130 = por %p128, %p129
      %p131 = scmp.ne.s32.totalorder %s122, %s123
      %p132 = scmp.eq.s32.totalorder %s23, 0
      %p133 = por %p131, %p132
      %p134 = scmp.ne.s32.totalorder %s122, %s123
      %p135 = scmp.eq.s32.totalorder %s24, 1
      %p136 = por %p134, %p135
      %p138 = scmp.ne.s32.totalorder %s123, %s137
      %p139 = scmp.eq.s32.totalorder %s24, 0
      %p140 = por %p138, %p139
      %s142 = sadd.s32 %s141, 1
      %p145 = scmp.eq.s32.totalorder %s18, 1
      %p146 = scmp.ne.s32.totalorder %s141, %s143
      %p147 = scmp.eq.s32.totalorder %s18, 0
      %p148 = por %p146, %p147
      %p149 = scmp.ne.s32.totalorder %s141, %s143
      %p150 = scmp.eq.s32.totalorder %s23, 1
      %p151 = por %p149, %p150
      %p152 = scmp.ne.s32.totalorder %s143, %s144
      %p153 = scmp.eq.s32.totalorder %s23, 0
      %p154 = por %p152, %p153
      %p155 = scmp.ne.s32.totalorder %s143, %s144
      %p156 = scmp.eq.s32.totalorder %s24, 1
      %p157 = por %p155, %p156
      %p159 = scmp.ne.s32.totalorder %s144, %s158
      %p160 = scmp.eq.s32.totalorder %s24, 0
      %p161 = por %p159, %p160
      %s162 = ssub.s32 %s18, %s25
      %p163 = scmp.eq.s32.totalorder %s162, 0
      %s165 = sadd.s32 %s164, 1
      %s166 = scalar_select %p163, %s164, %s165
      %p169 = pneg %p163
      %p170 = scmp.eq.s32.totalorder %s18, 1
      %p171 = por %p169, %p170
      %p172 = scmp.ne.s32.totalorder %s164, %s167
      %p173 = scmp.eq.s32.totalorder %s18, 0
      %p174 = por %p172, %p173
      %p175 = scmp.ne.s32.totalorder %s164, %s167
      %p176 = scmp.eq.s32.totalorder %s23, 1
      %p177 = por %p175, %p176
      %p178 = scmp.ne.s32.totalorder %s167, %s168
      %p179 = scmp.eq.s32.totalorder %s23, 0
      %p180 = por %p178, %p179
      %p181 = scmp.ne.s32.totalorder %s167, %s168
      %p182 = scmp.eq.s32.totalorder %s24, 1
      %p183 = por %p181, %p182
      %p185 = scmp.ne.s32.totalorder %s168, %s184
      %p186 = scmp.eq.s32.totalorder %s24, 0
      %p187 = por %p185, %p186
      %p188 = scmp.le.s32.totalorder 1, %s18
      %p189 = scmp.lt.s32.totalorder %s18, 3
      %p190 = pnand %p188, %p189
      %p191 = pneg %p190
      // Predicated region
      $region9: #{tpu_custom_call.1} parent=5 // pred_check
        _
      $region10: #{tpu_custom_call.1} parent=5 // pred_check_branch
        %193 = sbr.rel (%p190) target = $region12
      $region11: #{tpu_custom_call.1} parent=5 // pred_region
        %s194 = ssub.s32 %s18, 1
        // Predicated region
        $region13: #{tpu_custom_call.1} parent=11 // pred_check
          %p195 = pneg %p91
        $region14: #{tpu_custom_call.1} parent=11 // pred_check_branch
          %197 = sbr.rel (%p195) target = $region16
        $region15: #{tpu_custom_call.1} parent=11 // pred_region
          _
        $region16: #{tpu_custom_call.1} parent=11 // pred_fallthru
          _
        // Predicated region
        $region17: #{tpu_custom_call.1} parent=11 // pred_check
          %p198 = pneg %p112
        $region18: #{tpu_custom_call.1} parent=11 // pred_check_branch
          %200 = sbr.rel (%p198) target = $region20
        $region19: #{tpu_custom_call.1} parent=11 // pred_region
          _
        $region20: #{tpu_custom_call.1} parent=11 // pred_fallthru
          _
        // Predicated region
        $region21: #{tpu_custom_call.1} parent=11 // pred_check
          %p201 = pneg %p133
        $region22: #{tpu_custom_call.1} parent=11 // pred_check_branch
          %203 = sbr.rel (%p201) target = $region24
        $region23: #{tpu_custom_call.1} parent=11 // pred_region
          _
        $region24: #{tpu_custom_call.1} parent=11 // pred_fallthru
          _
        // Predicated region
        $region25: #{tpu_custom_call.1} parent=11 // pred_check
          %p204 = pneg %p154
        $region26: #{tpu_custom_call.1} parent=11 // pred_check_branch
          %206 = sbr.rel (%p204) target = $region28
        $region27: #{tpu_custom_call.1} parent=11 // pred_region
          _
        $region28: #{tpu_custom_call.1} parent=11 // pred_fallthru
          _
      $region12: #{tpu_custom_call.1} parent=5 // pred_fallthru
        _
      %p207 = scmp.lt.s32.totalorder %s18, 2
      // Predicated region
      $region29: #{tpu_custom_call.1} parent=5 // pred_check
        %p208 = pneg %p207
      $region30: #{tpu_custom_call.1} parent=5 // pred_check_branch
        %210 = sbr.rel (%p208) target = $region32
      $region31: #{tpu_custom_call.1} parent=5 // pred_region
        // Predicated region
        $region33: #{tpu_custom_call.1} parent=31 // pred_check
          %p211 = pneg %p38
        $region34: #{tpu_custom_call.1} parent=31 // pred_check_branch
          %213 = sbr.rel (%p211) target = $region36
        $region35: #{tpu_custom_call.1} parent=31 // pred_region
          %s214 = smul.u32 2, %s18
          %p215 = scmp.lt.s32.totalorder %s214, 3
          %s216 = scalar_select %p215, %s214, 3
          %s217 = smul.addr %s216, 4
          %s218 = scalar_lea.vmem %s0, %s217
          %s219 = smul.u32 2, %s18
        $region36: #{tpu_custom_call.1} parent=31 // pred_fallthru
          _
        // Predicated region
        $region37: #{tpu_custom_call.1} parent=31 // pred_check
          %p220 = pneg %p64
        $region38: #{tpu_custom_call.1} parent=31 // pred_check_branch
          %222 = sbr.rel (%p220) target = $region40
        $region39: #{tpu_custom_call.1} parent=31 // pred_region
          %s223 = sand.u32 %s54, 1
          %s224 = scalar_lea.sflag [#allocation3], %s223
          %s225 = sand.u32 %s54, 1
          %s226 = smul.addr %s225, 8
          %s227 = scalar_lea.vmem [#allocation2], %s226
          %s229 = ssub.s32 128, 128
          %230 = vsyncadd %s224, %s229
          %s231 = smul.addr %s18, 2
          %s232 = smul.addr %s231, 64
          %s233 = scalar_lea.hbm %s1, %s232
          %s234 = sshll.u32 %s227, 4
          %s235 = int_to_ptr.vmem [resolvable:$true] %s234
          %240 = dma.hbm_to_vmem [thread:$0]  %s233, 128, %s235, %s224, 64, 64, 4
        $region40: #{tpu_custom_call.1} parent=31 // pred_fallthru
          _
      $region32: #{tpu_custom_call.1} parent=5 // pred_fallthru
        _
      %p241 = scmp.le.s32.totalorder 1, %s18
      %p242 = scmp.lt.s32.totalorder %s18, 3
      %p243 = pnand %p241, %p242
      %p244 = pneg %p243
      // Predicated region
      $region41: #{tpu_custom_call.1} parent=5 // pred_check
        _
      $region42: #{tpu_custom_call.1} parent=5 // pred_check_branch
        %246 = sbr.rel (%p243) target = $region44
      $region43: #{tpu_custom_call.1} parent=5 // pred_region
        %s247 = ssub.s32 %s18, 1
        %s248 = sand.u32 %s57, 1
        %s249 = scalar_lea.sflag [#allocation3], %s248
        %s250 = sand.u32 %s57, 1
        %s251 = smul.addr %s250, 8
        %s252 = scalar_lea.vmem [#allocation2], %s251
        // Predicated region
        $region45: #{tpu_custom_call.1} parent=43 // pred_check
          %p253 = pneg %p70
        $region46: #{tpu_custom_call.1} parent=43 // pred_check_branch
          %255 = sbr.rel (%p253) target = $region48
        $region47: #{tpu_custom_call.1} parent=43 // pred_region
          %256 = dma.done %s249, 128
        $region48: #{tpu_custom_call.1} parent=43 // pred_fallthru
          _
        %s257 = smul.u32 2, %s23
        %p258 = scmp.lt.s32.totalorder %s257, 3
        %s259 = scalar_select %p258, %s257, 3
        %s260 = smul.addr %s259, 4
        %s261 = scalar_lea.vmem %s0, %s260
        %p262 = pneg %p44
        %p263 = pneg %p41
        %s264 = sand.u32 %s57, 1
        %s265 = scalar_lea.sflag [#allocation3], %s264
        %s266 = sand.u32 %s57, 1
        %s267 = smul.addr %s266, 8
        %s268 = scalar_lea.vmem [#allocation2], %s267
        %p269 = pneg %p70
        %p270 = pneg %p67
        %p271 = pneg %p91
        %p272 = pneg %p88
        %p273 = pneg %p112
        %p274 = pneg %p109
        %p275 = pneg %p133
        %p276 = pneg %p130
        %p277 = pneg %p154
        %p278 = pneg %p151
        %p279 = pneg %p180
        %p280 = pneg %p177
        %s281 = sand.u32 %s167, 1
        %s282 = scalar_lea.sflag [#allocation4], %s281
        %s283 = sand.u32 %s167, 1
        %s284 = scalar_lea.vmem [#allocation5], %s283
        %s285 = smul.u32 2, %s23
        %p286 = scmp.lt.s32.totalorder %s285, 3
        %s287 = scalar_select %p286, %s285, 3
        %s288 = smul.addr %s287, 4
        %s289 = scalar_lea.vmem %s0, %s288
        %s290 = smul.u32 2, %s23
        %v292 = vld [vmem:[%s5] sm:$0xf]
        %v293 = vld [vmem:[%s289] sm:$0xf]
        %v294 = vld [vmem:[%s289 + $0x4] sm:$0xf]
        %v295 = vld [vmem:[%s2] sm:$0xf]
        %v296 = vlaneseq
        %v297 = vshrl.u32 %v296, 7
        %v298 = vsub.s32 0, %v297
        %v299 = vrot.slane %v292, %v298
        %v302 = vunpack.c.l.b16 %v293
        %v303 = vunpack.c.l.b16 %v294
        %v304 = vpack.c.b16 %v303, %v302
        %vm305 = vcmask 64512
        %v307 = vsel %vm305, %v304, 0
        %vm309 = vcmask 1043456
        %v311 = vsel %vm309, %v295, 0
        %313 = vmatprep.subr.bf16.mxu0 0
        %314 = vmatpush1.bf16.msra.mxu0 0
        %315 = vmatprep.subr.bf16.mxu0 0
        %316 = vmatpush1.bf16.msra.mxu0 0
        %317 = vmatprep.subr.bf16.mxu0 0
        %318 = vmatpush1.bf16.msra.mxu0 0
        %319 = vmatprep.subr.bf16.mxu0 0
        %320 = vmatpush1.bf16.msra.mxu0 0
        %321 = vmatprep.subr.bf16.mxu0 0
        %322 = vmatpush1.bf16.msra.mxu0 0
        %323 = vmatprep.subr.bf16.mxu0 0
        %324 = vmatpush1.bf16.msra.mxu0 0
        %325 = vmatprep.subr.bf16.mxu0 0
        %326 = vmatpush1.bf16.msra.mxu0 0
        %327 = vmatprep.subr.bf16.mxu0 0
        %328 = vmatpush1.bf16.msra.mxu0 %v311
        %329 = vmatprep.subr.bf16.mxu0 0
        %330 = vmatpush2.bf16.msra.mxu0 0
        %331 = vmatprep.subr.bf16.mxu0 0
        %332 = vmatpush2.bf16.msra.mxu0 0
        %333 = vmatprep.subr.bf16.mxu0 0
        %334 = vmatpush2.bf16.msra.mxu0 0
        %335 = vmatprep.subr.bf16.mxu0 0
        %336 = vmatpush2.bf16.msra.mxu0 0
        %337 = vmatprep.subr.bf16.mxu0 0
        %338 = vmatpush2.bf16.msra.mxu0 0
        %339 = vmatprep.subr.bf16.mxu0 0
        %340 = vmatpush2.bf16.msra.mxu0 0
        %341 = vmatprep.subr.bf16.mxu0 0
        %342 = vmatpush2.bf16.msra.mxu0 0
        %343 = vmatprep.subr.bf16.mxu0 0
        %344 = vmatpush2.bf16.msra.mxu0 0
        %345 = vmatprep.mubr.bf16.mxu0 0
        %346 = vmatmul.mubr.bf16.gmra.mxu0 %v307
        %v347 = vpop.f32.mrf.mxu0
        %v348 = vadd.f32 %v299, %v347
        %v349 = vpop.f32.mrf.mxu0
        %v350 = vpop.f32.mrf.mxu0
        %v351 = vadd.f32 %v299, %v350
        %v352 = vpop.f32.mrf.mxu0
        %353 = vdwg.mxu0
        %v354 = vmax.f32 %v348, 0.0
        %v355 = vmax.f32 %v351, 0.0
        %v356 = vpack.c.bf16 %v355, %v354
        %v357 = vld [vmem:[%s3] sm:$0xf]
        %v358 = vld [vmem:[%s3 + $0x4] sm:$0xf]
        %v359 = vld [vmem:[%s3 + $0x8] sm:$0xf]
        %v360 = vld [vmem:[%s3 + $0xc] sm:$0xf]
        %v365 = vunpack.c.l.b16 %v357
        %v366 = vunpack.c.l.b16 %v358
        %v367 = vunpack.c.l.b16 %v359
        %v368 = vunpack.c.l.b16 %v360
        %v369 = vpack.c.b16 %v366, %v365
        %v370 = vpack.c.b16 %v368, %v367
        %vm373 = vcmask 261120
        %v375 = vsel %vm373, %v356, 0
        %377 = vmatprep.subr.bf16.mxu0 0
        %378 = vmatpush1.bf16.msra.mxu0 0
        %379 = vmatprep.subr.bf16.mxu0 0
        %380 = vmatpush1.bf16.msra.mxu0 0
        %381 = vmatprep.subr.bf16.mxu0 0
        %382 = vmatpush1.bf16.msra.mxu0 0
        %383 = vmatprep.subr.bf16.mxu0 0
        %384 = vmatpush1.bf16.msra.mxu0 0
        %385 = vmatprep.subr.bf16.mxu0 0
        %386 = vmatpush1.bf16.msra.mxu0 0
        %387 = vmatprep.subr.bf16.mxu0 0
        %388 = vmatpush1.bf16.msra.mxu0 0
        %389 = vmatprep.subr.bf16.mxu0 0
        %390 = vmatpush1.bf16.msra.mxu0 %v370
        %391 = vmatprep.subr.bf16.mxu0 0
        %392 = vmatpush1.bf16.msra.mxu0 %v369
        %393 = vmatprep.subr.bf16.mxu0 0
        %394 = vmatpush2.bf16.msra.mxu0 0
        %395 = vmatprep.subr.bf16.mxu0 0
        %396 = vmatpush2.bf16.msra.mxu0 0
        %397 = vmatprep.subr.bf16.mxu0 0
        %398 = vmatpush2.bf16.msra.mxu0 0
        %399 = vmatprep.subr.bf16.mxu0 0
        %400 = vmatpush2.bf16.msra.mxu0 0
        %401 = vmatprep.subr.bf16.mxu0 0
        %402 = vmatpush2.bf16.msra.mxu0 0
        %403 = vmatprep.subr.bf16.mxu0 0
        %404 = vmatpush2.bf16.msra.mxu0 0
        %405 = vmatprep.subr.bf16.mxu0 0
        %406 = vmatpush2.bf16.msra.mxu0 0
        %407 = vmatprep.subr.bf16.mxu0 0
        %408 = vmatpush2.bf16.msra.mxu0 0
        %409 = vmatprep.mubr.bf16.mxu0 0
        %410 = vmatmul.mubr.bf16.gmra.mxu0 %v375
        %v411 = vpop.f32.mrf.mxu0
        %v412 = vadd.f32 0.0, %v411
        %v413 = vpop.f32.mrf.mxu0
        %v414 = vpop.f32.mrf.mxu0
        %v415 = vadd.f32 0.0, %v414
        %v416 = vpop.f32.mrf.mxu0
        %417 = vdwg.mxu0
        %v418 = vpack.c.bf16 %v415, %v412
        %v419 = vld [vmem:[%s252] sm:$0xf]
        %v420 = vld [vmem:[%s252 + $0x4] sm:$0xf]
        %v421 = vlaneseq
        %v422 = vshrl.u32 %v421, 7
        %v423 = vsub.s32 1, %v422
        %v424 = vrot.slane %v292, %v423
        %v427 = vunpack.c.l.b16 %v419
        %v428 = vunpack.c.l.b16 %v420
        %v429 = vpack.c.b16 %v428, %v427
        %vm430 = vcmask 130048
        %v432 = vsel %vm430, %v429, 0
        %434 = vmatprep.subr.bf16.mxu0 0
        %435 = vmatpush1.bf16.msra.mxu0 0
        %436 = vmatprep.subr.bf16.mxu0 0
        %437 = vmatpush1.bf16.msra.mxu0 0
        %438 = vmatprep.subr.bf16.mxu0 0
        %439 = vmatpush1.bf16.msra.mxu0 0
        %440 = vmatprep.subr.bf16.mxu0 0
        %441 = vmatpush1.bf16.msra.mxu0 0
        %442 = vmatprep.subr.bf16.mxu0 0
        %443 = vmatpush1.bf16.msra.mxu0 0
        %444 = vmatprep.subr.bf16.mxu0 0
        %445 = vmatpush1.bf16.msra.mxu0 0
        %446 = vmatprep.subr.bf16.mxu0 0
        %447 = vmatpush1.bf16.msra.mxu0 0
        %448 = vmatprep.subr.bf16.mxu0 0
        %449 = vmatpush1.bf16.msra.mxu0 %v418
        %450 = vmatprep.subr.bf16.mxu0 0
        %451 = vmatpush2.bf16.msra.mxu0 0
        %452 = vmatprep.subr.bf16.mxu0 0
        %453 = vmatpush2.bf16.msra.mxu0 0
        %454 = vmatprep.subr.bf16.mxu0 0
        %455 = vmatpush2.bf16.msra.mxu0 0
        %456 = vmatprep.subr.bf16.mxu0 0
        %457 = vmatpush2.bf16.msra.mxu0 0
        %458 = vmatprep.subr.bf16.mxu0 0
        %459 = vmatpush2.bf16.msra.mxu0 0
        %460 = vmatprep.subr.bf16.mxu0 0
        %461 = vmatpush2.bf16.msra.mxu0 0
        %462 = vmatprep.subr.bf16.mxu0 0
        %463 = vmatpush2.bf16.msra.mxu0 0
        %464 = vmatprep.subr.bf16.mxu0 0
        %465 = vmatpush2.bf16.msra.mxu0 0
        %466 = vmatprep.mubr.bf16.mxu0 0
        %467 = vmatmul.mubr.bf16.gmra.mxu0 %v432
        %v468 = vpop.f32.mrf.mxu0
        %v469 = vadd.f32 %v424, %v468
        %v470 = vpop.f32.mrf.mxu0
        %v471 = vpop.f32.mrf.mxu0
        %v472 = vadd.f32 %v424, %v471
        %v473 = vpop.f32.mrf.mxu0
        %474 = vdwg.mxu0
        %v475 = vmax.f32 %v469, 0.0
        %v476 = vmax.f32 %v472, 0.0
        %v477 = vpack.c.bf16 %v476, %v475
        %s478 = scalar_lea.vmem %s3, 16
        %v479 = vld [vmem:[%s478] sm:$0xf]
        %v480 = vld [vmem:[%s478 + $0x4] sm:$0xf]
        %v481 = vld [vmem:[%s478 + $0x8] sm:$0xf]
        %v482 = vld [vmem:[%s478 + $0xc] sm:$0xf]
        %v487 = vunpack.c.l.b16 %v479
        %v488 = vunpack.c.l.b16 %v480
        %v489 = vunpack.c.l.b16 %v481
        %v490 = vunpack.c.l.b16 %v482
        %v491 = vpack.c.b16 %v488, %v487
        %v492 = vpack.c.b16 %v490, %v489
        %v496 = vsel %vm373, %v477, 0
        %498 = vmatprep.subr.bf16.mxu0 0
        %499 = vmatpush1.bf16.msra.mxu0 0
        %500 = vmatprep.subr.bf16.mxu0 0
        %501 = vmatpush1.bf16.msra.mxu0 0
        %502 = vmatprep.subr.bf16.mxu0 0
        %503 = vmatpush1.bf16.msra.mxu0 0
        %504 = vmatprep.subr.bf16.mxu0 0
        %505 = vmatpush1.bf16.msra.mxu0 0
        %506 = vmatprep.subr.bf16.mxu0 0
        %507 = vmatpush1.bf16.msra.mxu0 0
        %508 = vmatprep.subr.bf16.mxu0 0
        %509 = vmatpush1.bf16.msra.mxu0 0
        %510 = vmatprep.subr.bf16.mxu0 0
        %511 = vmatpush1.bf16.msra.mxu0 %v492
        %512 = vmatprep.subr.bf16.mxu0 0
        %513 = vmatpush1.bf16.msra.mxu0 %v491
        %514 = vmatprep.subr.bf16.mxu0 0
        %515 = vmatpush2.bf16.msra.mxu0 0
        %516 = vmatprep.subr.bf16.mxu0 0
        %517 = vmatpush2.bf16.msra.mxu0 0
        %518 = vmatprep.subr.bf16.mxu0 0
        %519 = vmatpush2.bf16.msra.mxu0 0
        %520 = vmatprep.subr.bf16.mxu0 0
        %521 = vmatpush2.bf16.msra.mxu0 0
        %522 = vmatprep.subr.bf16.mxu0 0
        %523 = vmatpush2.bf16.msra.mxu0 0
        %524 = vmatprep.subr.bf16.mxu0 0
        %525 = vmatpush2.bf16.msra.mxu0 0
        %526 = vmatprep.subr.bf16.mxu0 0
        %527 = vmatpush2.bf16.msra.mxu0 0
        %528 = vmatprep.subr.bf16.mxu0 0
        %529 = vmatpush2.bf16.msra.mxu0 0
        %530 = vmatprep.mubr.bf16.mxu0 0
        %531 = vmatmul.mubr.bf16.gmra.mxu0 %v496
        %v532 = vpop.f32.mrf.mxu0
        %v533 = vadd.f32 0.0, %v532
        %v534 = vpop.f32.mrf.mxu0
        %v535 = vpop.f32.mrf.mxu0
        %v536 = vadd.f32 0.0, %v535
        %v537 = vpop.f32.mrf.mxu0
        %538 = vdwg.mxu0
        %v539 = vpack.c.bf16 %v536, %v533
        %v540 = vlaneseq
        %v541 = vshrl.u32 %v540, 7
        %v542 = vsub.s32 2, %v541
        %v543 = vrot.slane %v292, %v542
        %544 = vmatprep.subr.bf16.mxu0 0
        %545 = vmatpush1.bf16.msra.mxu0 0
        %546 = vmatprep.subr.bf16.mxu0 0
        %547 = vmatpush1.bf16.msra.mxu0 0
        %548 = vmatprep.subr.bf16.mxu0 0
        %549 = vmatpush1.bf16.msra.mxu0 0
        %550 = vmatprep.subr.bf16.mxu0 0
        %551 = vmatpush1.bf16.msra.mxu0 0
        %552 = vmatprep.subr.bf16.mxu0 0
        %553 = vmatpush1.bf16.msra.mxu0 0
        %554 = vmatprep.subr.bf16.mxu0 0
        %555 = vmatpush1.bf16.msra.mxu0 0
        %556 = vmatprep.subr.bf16.mxu0 0
        %557 = vmatpush1.bf16.msra.mxu0 0
        %558 = vmatprep.subr.bf16.mxu0 0
        %559 = vmatpush1.bf16.msra.mxu0 %v539
        %560 = vmatprep.subr.bf16.mxu0 0
        %561 = vmatpush2.bf16.msra.mxu0 0
        %562 = vmatprep.subr.bf16.mxu0 0
        %563 = vmatpush2.bf16.msra.mxu0 0
        %564 = vmatprep.subr.bf16.mxu0 0
        %565 = vmatpush2.bf16.msra.mxu0 0
        %566 = vmatprep.subr.bf16.mxu0 0
        %567 = vmatpush2.bf16.msra.mxu0 0
        %568 = vmatprep.subr.bf16.mxu0 0
        %569 = vmatpush2.bf16.msra.mxu0 0
        %570 = vmatprep.subr.bf16.mxu0 0
        %571 = vmatpush2.bf16.msra.mxu0 0
        %572 = vmatprep.subr.bf16.mxu0 0
        %573 = vmatpush2.bf16.msra.mxu0 0
        %574 = vmatprep.subr.bf16.mxu0 0
        %575 = vmatpush2.bf16.msra.mxu0 0
        %576 = vmatprep.mubr.bf16.mxu0 0
        %577 = vmatmul.mubr.bf16.gmra.mxu0 %v432
        %v578 = vpop.f32.mrf.mxu0
        %v579 = vadd.f32 %v543, %v578
        %v580 = vpop.f32.mrf.mxu0
        %v581 = vpop.f32.mrf.mxu0
        %v582 = vadd.f32 %v543, %v581
        %v583 = vpop.f32.mrf.mxu0
        %584 = vdwg.mxu0
        %v585 = vmax.f32 %v579, 0.0
        %v586 = vmax.f32 %v582, 0.0
        %v587 = vsel %vm373, %v585, 0.0
        %v588 = vsel %vm373, %v586, 0.0
        %v589 = vadd.f32 %v587, %v588
        %v590 = vrot.slane %v589, 4
        %v591 = vadd.f32 %v589, %v590
        %v592 = vrot.slane %v591, 2
        %v593 = vadd.f32 %v591, %v592
        %v594 = vrot.slane %v593, 1
        %v595 = vadd.f32 %v593, %v594
        %v596 = vmul.f32 %v595, 0.0625
        %v597 = vpack.c.bf16 %v596, %v596
        %v598 = vld [vmem:[%s4] sm:$0xf]
        %v599 = vld [vmem:[%s4 + $0x4] sm:$0xf]
        %v600 = vld [vmem:[%s4 + $0x8] sm:$0xf]
        %v601 = vld [vmem:[%s4 + $0xc] sm:$0xf]
        %v606 = vunpack.c.l.b16 %v598
        %v607 = vunpack.c.l.b16 %v599
        %v608 = vunpack.c.l.b16 %v600
        %v609 = vunpack.c.l.b16 %v601
        %v610 = vpack.c.b16 %v607, %v606
        %v611 = vpack.c.b16 %v609, %v608
        %v615 = vrot.slane %v292, 3
        %v618 = vsel %vm373, %v597, 0
        %620 = vmatprep.subr.bf16.mxu0 0
        %621 = vmatpush1.bf16.msra.mxu0 0
        %622 = vmatprep.subr.bf16.mxu0 0
        %623 = vmatpush1.bf16.msra.mxu0 0
        %624 = vmatprep.subr.bf16.mxu0 0
        %625 = vmatpush1.bf16.msra.mxu0 0
        %626 = vmatprep.subr.bf16.mxu0 0
        %627 = vmatpush1.bf16.msra.mxu0 0
        %628 = vmatprep.subr.bf16.mxu0 0
        %629 = vmatpush1.bf16.msra.mxu0 0
        %630 = vmatprep.subr.bf16.mxu0 0
        %631 = vmatpush1.bf16.msra.mxu0 0
        %632 = vmatprep.subr.bf16.mxu0 0
        %633 = vmatpush1.bf16.msra.mxu0 %v611
        %634 = vmatprep.subr.bf16.mxu0 0
        %635 = vmatpush1.bf16.msra.mxu0 %v610
        %636 = vmatprep.subr.bf16.mxu0 0
        %637 = vmatpush2.bf16.msra.mxu0 0
        %638 = vmatprep.subr.bf16.mxu0 0
        %639 = vmatpush2.bf16.msra.mxu0 0
        %640 = vmatprep.subr.bf16.mxu0 0
        %641 = vmatpush2.bf16.msra.mxu0 0
        %642 = vmatprep.subr.bf16.mxu0 0
        %643 = vmatpush2.bf16.msra.mxu0 0
        %644 = vmatprep.subr.bf16.mxu0 0
        %645 = vmatpush2.bf16.msra.mxu0 0
        %646 = vmatprep.subr.bf16.mxu0 0
        %647 = vmatpush2.bf16.msra.mxu0 0
        %648 = vmatprep.subr.bf16.mxu0 0
        %649 = vmatpush2.bf16.msra.mxu0 0
        %650 = vmatprep.subr.bf16.mxu0 0
        %651 = vmatpush2.bf16.msra.mxu0 0
        %652 = vmatprep.mubr.bf16.mxu0 0
        %653 = vmatmul.mubr.bf16.gmra.mxu0 %v618
        %v654 = vpop.f32.mrf.mxu0
        %v655 = vadd.f32 %v615, %v654
        %v656 = vpop.f32.mrf.mxu0
        %v657 = vpop.f32.mrf.mxu0
        %v658 = vpop.f32.mrf.mxu0
        %659 = vdwg.mxu0
        %vm660 = vcmask 24576
        %661 = vst.msk [vmem:[%s284] sm:$0x1] %vm660, %v655
        %s662 = sand.u32 %s167, 1
        %s663 = scalar_lea.sflag [#allocation4], %s662
        %s664 = sand.u32 %s167, 1
        %s665 = scalar_lea.vmem [#allocation5], %s664
        // Predicated region
        $region49: #{tpu_custom_call.1} parent=43 // pred_check
          %p666 = pneg %p177
        $region50: #{tpu_custom_call.1} parent=43 // pred_check_branch
          %668 = sbr.rel (%p666) target = $region52
        $region51: #{tpu_custom_call.1} parent=43 // pred_region
          %s670 = ssub.s32 16, 16
          %671 = vsyncadd %s663, %s670
          %s672 = smul.addr %s23, 16
          %s673 = scalar_lea.hbm %s6, %s672
          %s675 = sshll.u32 %s665, 4
          %s676 = int_to_ptr.vmem [resolvable:$true] %s675
          %678 = dma.vmem_to_hbm [thread:$0]  %s676, 16, %s673, %s663
        $region52: #{tpu_custom_call.1} parent=43 // pred_fallthru
          _
      $region44: #{tpu_custom_call.1} parent=5 // pred_fallthru
        _
      %p679 = scmp.le.s32.totalorder 2, %s18
      // Predicated region
      $region53: #{tpu_custom_call.1} parent=5 // pred_check
        %p680 = pneg %p679
      $region54: #{tpu_custom_call.1} parent=5 // pred_check_branch
        %682 = sbr.rel (%p680) target = $region56
      $region55: #{tpu_custom_call.1} parent=5 // pred_region
        %s683 = ssub.s32 %s18, 2
        // Predicated region
        $region57: #{tpu_custom_call.1} parent=55 // pred_check
          %p684 = pneg %p183
        $region58: #{tpu_custom_call.1} parent=55 // pred_check_branch
          %686 = sbr.rel (%p684) target = $region60
        $region59: #{tpu_custom_call.1} parent=55 // pred_region
          %s687 = sand.u32 %s168, 1
          %s688 = scalar_lea.sflag [#allocation4], %s687
          %s689 = sand.u32 %s168, 1
          %s690 = scalar_lea.vmem [#allocation5], %s689
          %691 = dma.done %s688, 16
        $region60: #{tpu_custom_call.1} parent=55 // pred_fallthru
          _
      $region56: #{tpu_custom_call.1} parent=5 // pred_fallthru
        _
    $region6: #{tpu_custom_call.1} parent=1 // loop_footer
      %s22 = sadd.s32 1, %s18
    $region7: #{tpu_custom_call.1} parent=1 // loop_footer_branch
      %17 = sbr.rel target = $region3
    $region8: #{tpu_custom_call.1} parent=1 // loop_exit
      _
    %692 = vsyncpa [#allocation3], 1
    %s693 = scalar_lea.sflag [#allocation3], 1
    %694 = vsyncpa %s693, 1
    %695 = vsyncpa [#allocation4], 1
    %s696 = scalar_lea.sflag [#allocation4], 1
    %697 = vsyncpa %s696, 1

</llo_original>
